<compile_context>
chip_gen: v7x
topology: tpu7x:2x2x1
jax: 0.10.0
libtpu: 0.0.40
codegen_flags: <defaults>
</compile_context>

<pallas_src>
import functools

import jax
import jax.numpy as jnp
from jax.experimental import pallas as pl
from jax.experimental.pallas import tpu as pltpu


def _round_up(x: int, m: int) -> int:
    return ((x + m - 1) // m) * m


@functools.lru_cache(maxsize=1)
def _vmem_capacity_bytes() -> int:
    """Per-TensorCore VMEM capacity; conservative (v7x) fallback if unknown."""
    try:
        return int(pltpu.get_tpu_info().vmem_capacity_bytes)
    except Exception:
        return 64 * 1024 * 1024


@functools.lru_cache(maxsize=1)
def _device_kind() -> str:
    try:
        return jax.devices()[0].device_kind.lower()
    except Exception:
        return ""


def _pick_tile(dim: int, align: int, requested: int) -> int:
    """Pick a tile size (multiple of `align`, <= requested) minimizing padding.

    Preference order: single full (aligned) block if it fits the request;
    otherwise the largest tile that exactly divides the aligned dim; otherwise
    the largest tile with <=12.5% padding waste; otherwise the largest tile.
    """
    aligned = _round_up(dim, align)
    requested = max(align, (requested // align) * align)
    if aligned <= requested:
        return aligned
    candidates = list(range(align, requested + 1, align))
    exact = [t for t in candidates if aligned % t == 0]
    if exact:
        return max(exact)
    ok = [t for t in candidates if _round_up(dim, t) - aligned <= aligned // 8]
    if ok:
        return max(ok)
    return max(candidates)


def _tile_footprint(tm: int, tn: int, tk: int, itemsize: int,
                    needs_acc: bool) -> int:
    a = tm * tk * itemsize
    b = tk * tn * itemsize
    o = tm * tn * itemsize
    acc = tm * tn * 4 if needs_acc else 0
    # double-buffered A/B/out tiles + resident f32 accumulator
    return 2 * (a + b + o) + acc


# ---------------------------------------------------------------------------
# Kernels
# ---------------------------------------------------------------------------
def _matmul_kernel_acc(x1_ref, x2_ref, o_ref, acc_ref):
    """K-accumulating matmul with f32 VMEM scratch (for bf16/f16 outputs)."""
    @pl.when(pl.program_id(2) == 0)
    def _init():
        acc_ref[...] = jnp.zeros_like(acc_ref)

    acc_ref[...] += jnp.dot(
        x1_ref[...], x2_ref[...], preferred_element_type=jnp.float32
    )

    @pl.when(pl.program_id(2) == pl.num_programs(2) - 1)
    def _store():
        o_ref[...] = acc_ref[...].astype(o_ref.dtype)


def _matmul_kernel_inplace(x1_ref, x2_ref, o_ref):
    """f32-output matmul accumulating directly into the resident output tile."""
    @pl.when(pl.program_id(2) == 0)
    def _init():
        o_ref[...] = jnp.zeros_like(o_ref)

    o_ref[...] += jnp.dot(
        x1_ref[...], x2_ref[...], preferred_element_type=jnp.float32
    )


# ---------------------------------------------------------------------------
# pallas_call wrapper
# ---------------------------------------------------------------------------
@functools.partial(jax.jit, static_argnames=("tm", "tn", "tk",
                                             "vmem_limit_bytes"))
def _pallas_matmul_impl(x1, x2, *, tm, tn, tk, vmem_limit_bytes):
    M, K = x1.shape
    _, N = x2.shape
    out_dtype = x1.dtype  # operands already unified by the outer wrapper

    Mp = _round_up(M, tm)
    Np = _round_up(N, tn)
    Kp = _round_up(K, tk)

    # Zero-padding is exact for matmul; skipped when dims already align.
    if (Mp, Kp) != (M, K):
        x1 = jnp.pad(x1, ((0, Mp - M), (0, Kp - K)))
    if (Kp, Np) != (K, N):
        x2 = jnp.pad(x2, ((0, Kp - K), (0, Np - N)))

    use_inplace = out_dtype == jnp.dtype(jnp.float32)
    kernel = _matmul_kernel_inplace if use_inplace else _matmul_kernel_acc
    scratch = [] if use_inplace else [pltpu.VMEM((tm, tn), jnp.float32)]

    cost = pl.CostEstimate(
        flops=2 * M * N * K,
        transcendentals=0,
        bytes_accessed=(
            M * K * x1.dtype.itemsize
            + K * N * x2.dtype.itemsize
            + M * N * jnp.dtype(out_dtype).itemsize
        ),
    )

    out_padded = pl.pallas_call(
        kernel,
        out_shape=jax.ShapeDtypeStruct((Mp, Np), out_dtype),
        grid_spec=pltpu.PrefetchScalarGridSpec(
            num_scalar_prefetch=0,
            grid=(Mp // tm, Np // tn, Kp // tk),
            in_specs=[
                pl.BlockSpec((tm, tk), lambda i, j, k: (i, k)),
                pl.BlockSpec((tk, tn), lambda i, j, k: (k, j)),
            ],
            out_specs=pl.BlockSpec((tm, tn), lambda i, j, k: (i, j)),
            scratch_shapes=scratch,
        ),
        compiler_params=pltpu.CompilerParams(
            dimension_semantics=("parallel", "parallel", "arbitrary"),
            vmem_limit_bytes=vmem_limit_bytes,
        ),
        cost_estimate=cost,
    )(x1, x2)

    if (Mp, Np) != (M, N):
        out_padded = out_padded[:M, :N]
    return out_padded


def pallas_matmul(x1: jax.Array, x2: jax.Array, *, tm: int = None,
                  tn: int = None, tk: int = None) -> jax.Array:
    """Computes x1 @ x2 (2-D, same semantics as torch's `@`)."""
    assert x1.ndim == 2 and x2.ndim == 2, "kernel handles 2-D matmul"
    M, K = x1.shape
    K2, N = x2.shape
    assert K == K2, f"inner dims must match: {K} vs {K2}"

    out_dtype = jnp.promote_types(x1.dtype, x2.dtype)
    if not jnp.issubdtype(out_dtype, jnp.floating):
        # TODO(synk): exact integer matmul (int32 accumulator) not implemented;
        # fall back to XLA to preserve integer semantics.
        return jnp.matmul(x1, x2)

    if x1.dtype != out_dtype:
        x1 = x1.astype(out_dtype)
    if x2.dtype != out_dtype:
        x2 = x2.astype(out_dtype)

    itemsize = jnp.dtype(out_dtype).itemsize
    m_align = 8 * max(1, 4 // itemsize)   # 8 for f32, 16 for bf16, 32 for 8-bit
    lane_align = 128

    # Large MXU/HBM-roofline-friendly defaults; clamped/divisor-picked below.
    req_tm = tm if tm is not None else 512
    req_tn = tn if tn is not None else 1024
    req_tk = tk if tk is not None else 1024

    tm = _pick_tile(M, m_align, req_tm)
    tn = _pick_tile(N, lane_align, req_tn)
    tk = _pick_tile(K, lane_align, req_tk)

    # v7x has 2 TensorCores per chip: keep >=2 parallel M/N tiles when possible.
    if "v7" in _device_kind():
        if pl.cdiv(M, tm) * pl.cdiv(N, tn) < 2:
            if _round_up(N, lane_align) >= 2 * lane_align:
                tn = _pick_tile(N, lane_align, max(lane_align, tn // 2))
            elif _round_up(M, m_align) >= 2 * m_align:
                tm = _pick_tile(M, m_align, max(m_align, tm // 2))

    # Per-generation VMEM budget: shrink tiles until the double-buffered
    # footprint fits comfortably (v5e/v6e: 128 MiB, v7x: 64 MiB).
    needs_acc = out_dtype != jnp.dtype(jnp.float32)
    vmem_cap = _vmem_capacity_bytes()
    budget = max(8 << 20, int(vmem_cap * 0.6))

    def footprint():
        return _tile_footprint(tm, tn, tk, itemsize, needs_acc)

    while footprint() > budget:
        if tk >= tn and tk >= tm and tk > lane_align:
            tk = max(lane_align, (tk // 2 // lane_align) * lane_align)
        elif tn >= tm and tn > lane_align:
            tn = max(lane_align, (tn // 2 // lane_align) * lane_align)
        elif tm > m_align:
            tm = max(m_align, (tm // 2 // m_align) * m_align)
        else:
            break

    vmem_limit = int(min(vmem_cap, max(32 << 20, footprint() + (16 << 20))))

    return _pallas_matmul_impl(x1, x2, tm=tm, tn=tn, tk=tk,
                               vmem_limit_bytes=vmem_limit)


if __name__ == "__main__":
    key = jax.random.PRNGKey(0)
    k1, k2 = jax.random.split(key)
    # Small shapes consistent with `x1 @ x2`: (seq=8, hidden=32) @ (32, 16)
    x1 = jax.random.normal(k1, (8, 32), dtype=jnp.float32)
    x2 = jax.random.normal(k2, (32, 16), dtype=jnp.float32)

    out = pallas_matmul(x1, x2)
    jax.block_until_ready(out)

    ref = x1 @ x2
    assert out.shape == ref.shape == (8, 16), (out.shape, ref.shape)
    assert jnp.allclose(out, ref, atol=1e-5, rtol=1e-5)
    print("KERNEL_OK")
</pallas_src>

<mosaic_0001>
module attributes {stable_mosaic.version = 11 : i64} {
  func.func @_matmul_kernel_inplace(%arg0: i32, %arg1: i32, %arg2: i32, %arg3: memref<8x128xf32, #tpu.memory_space<vmem>>, %arg4: memref<128x128xf32, #tpu.memory_space<vmem>>, %arg5: memref<8x128xf32, #tpu.memory_space<vmem>>) attributes {dimension_semantics = [#tpu.dimension_semantics<parallel>, #tpu.dimension_semantics<parallel>, #tpu.dimension_semantics<arbitrary>], iteration_bounds = array<i64: 1, 1, 1>, scalar_prefetch = 0 : i64, scratch_operands = 0 : i64, tpu.core_type = #tpu.core_type<tc>, window_params = [{transform_indices = @transform_0, window_bounds = array<i64: 8, 128>}, {transform_indices = @transform_1, window_bounds = array<i64: 128, 128>}, {transform_indices = @transform_2, window_bounds = array<i64: 8, 128>}]} {
    %c0_i32 = arith.constant 0 : i32
    %0 = arith.cmpi eq, %arg2, %c0_i32 : i32
    %1 = arith.extui %0 : i1 to i32
    %c0_i32_0 = arith.constant 0 : i32
    %2 = arith.cmpi ne, %1, %c0_i32_0 : i32
    scf.if %2 {
      %cst_8 = arith.constant 0.000000e+00 : f32
      %9 = vector.broadcast %cst_8 : f32 to vector<8x128xf32>
      %c0_9 = arith.constant 0 : index
      %c0_10 = arith.constant 0 : index
      %10 = vector.load %arg5[%c0_9, %c0_10] : memref<8x128xf32, #tpu.memory_space<vmem>>, vector<8x128xf32>
      tpu.vector_store %arg5[%c0_9, %c0_10], %9 {strides = array<i32>} : memref<8x128xf32, #tpu.memory_space<vmem>>, vector<8x128xf32>,
    } else {
    }
    %c0 = arith.constant 0 : index
    %c0_1 = arith.constant 0 : index
    %3 = vector.load %arg5[%c0, %c0_1] : memref<8x128xf32, #tpu.memory_space<vmem>>, vector<8x128xf32>
    %c0_2 = arith.constant 0 : index
    %c0_3 = arith.constant 0 : index
    %4 = vector.load %arg3[%c0_2, %c0_3] : memref<8x128xf32, #tpu.memory_space<vmem>>, vector<8x128xf32>
    %c0_4 = arith.constant 0 : index
    %c0_5 = arith.constant 0 : index
    %5 = vector.load %arg4[%c0_4, %c0_5] : memref<128x128xf32, #tpu.memory_space<vmem>>, vector<128x128xf32>
    %cst = arith.constant dense<0.000000e+00> : vector<8x128xf32>
    %6 = tpu.matmul %4, %5, %cst {dimension_numbers = #tpu.dot_dimension_numbers<[1], [0], [0], [1], [0, 0, 1, 1], [], []>} : vector<8x128xf32>, vector<128x128xf32>, vector<8x128xf32> -> vector<8x128xf32>
    %7 = arith.addf %3, %6 : vector<8x128xf32>
    %c0_6 = arith.constant 0 : index
    %c0_7 = arith.constant 0 : index
    %8 = vector.load %arg5[%c0_6, %c0_7] : memref<8x128xf32, #tpu.memory_space<vmem>>, vector<8x128xf32>
    tpu.vector_store %arg5[%c0_6, %c0_7], %7 {strides = array<i32>} : memref<8x128xf32, #tpu.memory_space<vmem>>, vector<8x128xf32>,
    return
  }
  func.func @transform_0(%arg0: i32, %arg1: i32, %arg2: i32) -> (i32, i32) {
    %c0_i32 = arith.constant 0 : i32
    return %arg0, %arg2 : i32, i32
  }
  func.func @transform_1(%arg0: i32, %arg1: i32, %arg2: i32) -> (i32, i32) {
    %c0_i32 = arith.constant 0 : i32
    return %arg2, %arg1 : i32, i32
  }
  func.func @transform_2(%arg0: i32, %arg1: i32, %arg2: i32) -> (i32, i32) {
    %c0_i32 = arith.constant 0 : i32
    return %arg0, %arg1 : i32, i32
  }
}

</mosaic_0001>

<llo_original>
// kernel: _pallas_matmul_impl.1
$region0: #{_pallas_matmul_impl.1}
  #allocation0 [shape = 'u32[]', space=smem, size = 0x4, offset = 0x4, fixed_abs, tag = 'smem constant byte address 0x4 - core index']
  #allocation1 [shape = 'u32[144,128]{1,0:T(1,128)}', space=vmem, size = 0x12000, scoped, tag = 'internal scratch']
  %s0 = inlined_call_operand.vmem [shape: f32[8,128], index: 0, kind: input, shape index: {}]
  %s1 = inlined_call_operand.vmem [shape: f32[128,128], index: 1, kind: input, shape index: {}]
  %s2 = inlined_call_operand.hbm [shape: f32[8,128], index: 2, kind: output, shape index: {}]
  %s3 = sld [smem:[#allocation0]]
  $region22: #{_pallas_matmul_impl.1} parent=0
    _
  %s5 = ssub.s32 1, %s3
  %s6 = scalar_select 0, %s5, %s3
  $region1: #{_pallas_matmul_impl.1} parent=0
    #allocation2 [shape = 'u8[4096]{0}', space=vmem, size = 0x1000, scoped, tag = 'output window, operand 0, single buffered']
    #allocation3 [shape = 's32[1]{0}', space=sflag, size = 0x4, scoped, tag = 'scoped memory for _pallas_matmul_impl.1']
    %7 = vsyncpa [#allocation3], 0
    // Predicated region
    $region2: #{_pallas_matmul_impl.1} parent=1 // pred_check
      _
    $region3: #{_pallas_matmul_impl.1} parent=1 // pred_check_branch
      %9 = sbr.rel (0) target = $region5
    $region4: #{_pallas_matmul_impl.1} parent=1 // pred_region
      _
    $region5: #{_pallas_matmul_impl.1} parent=1 // pred_fallthru
      _
    // Predicated region
    $region6: #{_pallas_matmul_impl.1} parent=1 // pred_check
      _
    $region7: #{_pallas_matmul_impl.1} parent=1 // pred_check_branch
      %11 = sbr.rel (0) target = $region9
    $region8: #{_pallas_matmul_impl.1} parent=1 // pred_region
      _
    $region9: #{_pallas_matmul_impl.1} parent=1 // pred_fallthru
      _
    %p12 = scmp.eq.s32.totalorder 0, 0
    // Predicated region
    $region10: #{_pallas_matmul_impl.1} parent=1 // pred_check
      %p13 = pneg %p12
    $region11: #{_pallas_matmul_impl.1} parent=1 // pred_check_branch
      %15 = sbr.rel (%p13) target = $region13
    $region12: #{_pallas_matmul_impl.1} parent=1 // pred_region
      %16 = vst [vmem:[#allocation2] sm:$0xff] 0.0
    $region13: #{_pallas_matmul_impl.1} parent=1 // pred_fallthru
      _
    %v17 = vld [vmem:[#allocation2] sm:$0xff]
    %v18 = vld [vmem:[%s0] sm:$0xff]
    %v19 = vld [vmem:[%s1] sm:$0xff]
    %v20 = vld [vmem:[%s1 + $0x8] sm:$0xff]
    %v21 = vld [vmem:[%s1 + $0x10] sm:$0xff]
    %v22 = vld [vmem:[%s1 + $0x18] sm:$0xff]
    %v23 = vld [vmem:[%s1 + $0x20] sm:$0xff]
    %v24 = vld [vmem:[%s1 + $0x28] sm:$0xff]
    %v25 = vld [vmem:[%s1 + $0x30] sm:$0xff]
    %v26 = vld [vmem:[%s1 + $0x38] sm:$0xff]
    %v27 = vld [vmem:[%s1 + $0x40] sm:$0xff]
    %v28 = vld [vmem:[%s1 + $0x48] sm:$0xff]
    %v29 = vld [vmem:[%s1 + $0x50] sm:$0xff]
    %v30 = vld [vmem:[%s1 + $0x58] sm:$0xff]
    %v31 = vld [vmem:[%s1 + $0x60] sm:$0xff]
    %v32 = vld [vmem:[%s1 + $0x68] sm:$0xff]
    %v33 = vld [vmem:[%s1 + $0x70] sm:$0xff]
    %v34 = vld [vmem:[%s1 + $0x78] sm:$0xff]
    %35 = vmatprep.subr.mxu0 0.0
    %36 = vmatpush1.msra.mxu0 %v19
    %37 = vmatprep.subr.mxu0 0.0
    %38 = vmatpush1.msra.mxu0 %v20
    %39 = vmatprep.subr.mxu0 0.0
    %40 = vmatpush1.msra.mxu0 %v21
    %41 = vmatprep.subr.mxu0 0.0
    %42 = vmatpush1.msra.mxu0 %v22
    %43 = vmatprep.subr.mxu0 0.0
    %44 = vmatpush1.msra.mxu0 %v23
    %45 = vmatprep.subr.mxu0 0.0
    %46 = vmatpush1.msra.mxu0 %v24
    %47 = vmatprep.subr.mxu0 0.0
    %48 = vmatpush1.msra.mxu0 %v25
    %49 = vmatprep.subr.mxu0 0.0
    %50 = vmatpush1.msra.mxu0 %v26
    %51 = vmatprep.subr.mxu0 0.0
    %52 = vmatpush1.msra.mxu0 %v27
    %53 = vmatprep.subr.mxu0 0.0
    %54 = vmatpush1.msra.mxu0 %v28
    %55 = vmatprep.subr.mxu0 0.0
    %56 = vmatpush1.msra.mxu0 %v29
    %57 = vmatprep.subr.mxu0 0.0
    %58 = vmatpush1.msra.mxu0 %v30
    %59 = vmatprep.subr.mxu0 0.0
    %60 = vmatpush1.msra.mxu0 %v31
    %61 = vmatprep.subr.mxu0 0.0
    %62 = vmatpush1.msra.mxu0 %v32
    %63 = vmatprep.subr.mxu0 0.0
    %64 = vmatpush1.msra.mxu0 %v33
    %65 = vmatprep.subr.mxu0 0.0
    %66 = vmatpush1.msra.mxu0 %v34
    %67 = vmatprep.subr.mxu0 0.0
    %68 = vmatpush1.msra.mxu0 0.0
    %69 = vmatprep.subr.mxu0 0.0
    %70 = vmatpush1.msra.mxu0 0.0
    %71 = vmatprep.subr.mxu0 0.0
    %72 = vmatpush1.msra.mxu0 0.0
    %73 = vmatprep.subr.mxu0 0.0
    %74 = vmatpush1.msra.mxu0 0.0
    %75 = vmatprep.subr.mxu0 0.0
    %76 = vmatpush1.msra.mxu0 0.0
    %77 = vmatprep.subr.mxu0 0.0
    %78 = vmatpush1.msra.mxu0 0.0
    %79 = vmatprep.subr.mxu0 0.0
    %80 = vmatpush1.msra.mxu0 0.0
    %81 = vmatprep.subr.mxu0 0.0
    %82 = vmatpush1.msra.mxu0 0.0
    %83 = vmatprep.subr.mxu0 0.0
    %84 = vmatpush1.msra.mxu0 0.0
    %85 = vmatprep.subr.mxu0 0.0
    %86 = vmatpush1.msra.mxu0 0.0
    %87 = vmatprep.subr.mxu0 0.0
    %88 = vmatpush1.msra.mxu0 0.0
    %89 = vmatprep.subr.mxu0 0.0
    %90 = vmatpush1.msra.mxu0 0.0
    %91 = vmatprep.subr.mxu0 0.0
    %92 = vmatpush1.msra.mxu0 0.0
    %93 = vmatprep.subr.mxu0 0.0
    %94 = vmatpush1.msra.mxu0 0.0
    %95 = vmatprep.subr.mxu0 0.0
    %96 = vmatpush1.msra.mxu0 0.0
    %97 = vmatprep.subr.mxu0 0.0
    %98 = vmatpush1.msra.mxu0 0.0
    %99 = vmatprep.mubr.f32.mxu0 0.0
    %100 = vmatmul.mubr.f32.gmra.mrb[0].mxu0 %v18
    %v101 = vpop.f32.mrb[0].mxu0
    %v102 = vadd.f32 0.0, %v101
    %v103 = vpop.f32.mrb[0].mxu0
    %104 = vdwg.mxu0
    %v105 = vadd.f32 %v17, %v102
    %106 = vst [vmem:[#allocation2] sm:$0xff] %v105
    // Predicated region
    $region14: #{_pallas_matmul_impl.1} parent=1 // pred_check
      _
    $region15: #{_pallas_matmul_impl.1} parent=1 // pred_check_branch
      %108 = sbr.rel (0) target = $region17
    $region16: #{_pallas_matmul_impl.1} parent=1 // pred_region
      %s110 = ssub.s32 128, 128
      %111 = vsyncadd [#allocation3], %s110
      %s113 = sshll.u32 [#allocation2], 4
      %s114 = int_to_ptr.vmem [resolvable:$true] %s113
      %116 = dma.vmem_to_hbm [thread:$0]  %s114, 128, %s2, [#allocation3]
    $region17: #{_pallas_matmul_impl.1} parent=1 // pred_fallthru
      _
    // Predicated region
    $region18: #{_pallas_matmul_impl.1} parent=1 // pred_check
      _
    $region19: #{_pallas_matmul_impl.1} parent=1 // pred_check_branch
      %118 = sbr.rel (0) target = $region21
    $region20: #{_pallas_matmul_impl.1} parent=1 // pred_region
      %119 = dma.done [#allocation3], 128
    $region21: #{_pallas_matmul_impl.1} parent=1 // pred_fallthru
      _
    %120 = vsyncpa [#allocation3], 1

</llo_original>
